<compile_context>
chip_gen: v6e
topology: v6e:2x2x1
jax: 0.10.0
libtpu: 0.0.40
codegen_flags: <defaults>
</compile_context>

<pallas_src>
import functools

import jax
import jax.numpy as jnp
from jax.experimental import pallas as pl
from jax.experimental.pallas import tpu as pltpu


def _regcat_kernel(logits_ref, labels_ref, out_ref, *,
                   rho, tb, n, tiles_per_core, total_rows, full_tiles,
                   need_mask, reduce_rows):
    """One grid step: fused elementwise + sublane-slab partial accumulation.

    out_ref is the per-core accumulator block ((1, 8, n) f32, or (1, tb, n)
    for tiny inputs).  Its block index depends only on the "parallel" core
    axis, so it stays resident in VMEM across the inner "arbitrary" axis and
    is written back to HBM exactly once per core.
    """
    i = pl.program_id(1)

    @pl.when(i == 0)
    def _init():
        out_ref[...] = jnp.zeros_like(out_ref)

    x = logits_ref[...].astype(jnp.float32)
    y = labels_ref[...].astype(jnp.float32)
    # loss + reg contribution:  rho*x^2 - x*(2y-1)  ==  x*(rho*x - (2y-1))
    t = x * (rho * x - (2.0 * y - 1.0))

    def _accumulate(vals):
        if reduce_rows:
            # Fold row slabs onto an 8-sublane accumulator.  The reshape keeps
            # (8, n) as the two minor dims (no relayout); the sum over the new
            # leading axis is pure vreg adds (VPU only), no XLU in the loop.
            out_ref[...] += vals.reshape(1, tb // 8, 8, n).sum(axis=1)
        else:
            out_ref[...] += vals[None]

    if need_mask:
        gi = pl.program_id(0) * tiles_per_core + i      # logical tile index

        @pl.when(gi < full_tiles)                       # steady state: no mask
        def _full():
            _accumulate(t)

        @pl.when(gi >= full_tiles)                      # partial / empty tiles
        def _masked():
            row = gi * tb + jax.lax.broadcasted_iota(jnp.int32, t.shape, 0)
            _accumulate(jnp.where(row < total_rows, t, 0.0))
    else:
        _accumulate(t)


def regcat_loss(logits, labels, rho=None, *, tile_rows=None,
                target_tile_bytes=2 << 20):
    """loss + reg, identical math to the PyTorch RegCatLoss forward.

    Callers should pass the narrowest dtypes they have (bf16 logits, bf16/int8
    labels): the kernel upcasts to f32 internally and is HBM-bandwidth bound,
    so performance scales with input bytes.  Do NOT pre-cast in the wrapper.

    Note: the PyTorch module's explicit-rho branch reads an undefined local
    (`rho` on the RHS of its own assignment); we implement the intended
    semantics and use the passed `rho` when it is not None.
    """
    b, n = logits.shape
    assert labels.shape == (b, n), (logits.shape, labels.shape)
    rho_val = 0.5 * float(n) ** 2 if rho is None else float(rho)
    inv_bn = 1.0 / (float(b) * float(n))

    itemsizes = (jnp.dtype(logits.dtype).itemsize,
                 jnp.dtype(labels.dtype).itemsize)
    # Sublane packing of the narrowest input dtype: f32->8, bf16->16, int8->32.
    row_align = max(8, *(32 // s for s in itemsizes))

    # --- tile-row selection: by bytes (~2 MiB / input tile), aligned rows ---
    if tile_rows is None:
        tb = max(int(target_tile_bytes) // (n * max(itemsizes)), 1)
    else:
        tb = int(tile_rows)
    tb = max((tb // row_align) * row_align, row_align)
    if tb >= b:
        tb = b                       # single row tile; full-dim block is legal

    num_tiles = pl.cdiv(b, tb)
    # Leading "parallel" axis: one slice per TensorCore on v7x (2 TC/chip);
    # harmless (sequential) on v5e/v6e.
    n_splits = 2 if num_tiles >= 2 else 1
    tiles_per_core = pl.cdiv(num_tiles, n_splits)

    reduce_rows = (tb % 8 == 0)
    acc_rows = 8 if reduce_rows else tb
    full_tiles = b // tb
    need_mask = (n_splits * tiles_per_core * tb != b)

    last_tile = num_tiles - 1

    def in_index_map(c, i):
        # Clamp so tiles past the end of the batch (padding of the 2-way
        # split) re-read the last valid block; the mask zeroes them out.
        return (jnp.minimum(c * tiles_per_core + i, last_tile), 0)

    # --- explicit scoped-VMEM budget: 2x double-buffered input tiles + the
    #     tiny accumulator blocks + headroom for f32 elementwise temporaries.
    in_tile_bytes = tb * n * (itemsizes[0] + itemsizes[1])
    acc_bytes = acc_rows * n * 4
    tmp_bytes = 4 * tb * n * 4
    vmem_limit = 2 * in_tile_bytes + 2 * acc_bytes + tmp_bytes + (2 << 20)
    try:
        vmem_cap = int(pltpu.get_tpu_info().vmem_capacity_bytes)
    except Exception:                                     # pragma: no cover
        vmem_cap = 64 << 20
    vmem_limit = int(min(max(vmem_limit, 8 << 20),
                         max(vmem_cap * 3 // 4, 8 << 20),
                         48 << 20))                       # fits v7x's 64 MiB

    kernel = functools.partial(
        _regcat_kernel, rho=rho_val, tb=tb, n=n,
        tiles_per_core=tiles_per_core, total_rows=b, full_tiles=full_tiles,
        need_mask=need_mask, reduce_rows=reduce_rows)

    bytes_accessed = (logits.size * itemsizes[0]
                      + labels.size * itemsizes[1]
                      + n_splits * acc_rows * n * 4)
    cost = pl.CostEstimate(flops=5 * b * n, transcendentals=0,
                           bytes_accessed=bytes_accessed)

    out = pl.pallas_call(
        kernel,
        out_shape=jax.ShapeDtypeStruct((n_splits, acc_rows, n), jnp.float32),
        grid_spec=pltpu.PrefetchScalarGridSpec(
            num_scalar_prefetch=0,
            grid=(n_splits, tiles_per_core),
            in_specs=[
                pl.BlockSpec((tb, n), in_index_map),     # logits row tile
                pl.BlockSpec((tb, n), in_index_map),     # labels row tile
            ],
            out_specs=pl.BlockSpec((1, acc_rows, n), lambda c, i: (c, 0, 0)),
        ),
        compiler_params=pltpu.CompilerParams(
            dimension_semantics=("parallel", "arbitrary"),
            vmem_limit_bytes=vmem_limit,
        ),
        cost_estimate=cost,
    )(logits, labels)

    # Tiny final reduction (<= 2*8*n f32) + the mean divisor, done in JAX.
    return jnp.sum(out) * jnp.float32(inv_bn)


def _reference(logits, labels, rho=None):
    x = logits.astype(jnp.float32)
    y = labels.astype(jnp.float32)
    lbl = 2.0 * y - 1.0
    n = logits.shape[1]
    rho_val = 0.5 * float(n) ** 2 if rho is None else float(rho)
    return -jnp.mean(x * lbl) + rho_val * jnp.mean(x * x)


if __name__ == "__main__":
    key = jax.random.PRNGKey(0)
    k1, k2, k3, k4 = jax.random.split(key, 4)

    # Case 1: auto tile (single row tile, no mask), bf16 labels (narrow HBM).
    B1, N1 = 32, 256
    logits1 = jax.random.normal(k1, (B1, N1), dtype=jnp.float32)
    labels1 = jax.random.bernoulli(k2, 0.5, (B1, N1)).astype(jnp.bfloat16)
    out1 = jax.block_until_ready(regcat_loss(logits1, labels1))
    ref1 = _reference(logits1, labels1)
    assert jnp.allclose(out1, ref1, rtol=1e-4, atol=1e-4), (out1, ref1)

    # Case 2: multi-tile + 2-way core split + partial and fully-masked tiles,
    # bf16 labels (tile rows forced to the 16-row bf16 sublane packing).
    B2, N2 = 40, 128
    logits2 = jax.random.normal(k3, (B2, N2), dtype=jnp.float32)
    labels2 = jax.random.bernoulli(k4, 0.5, (B2, N2)).astype(jnp.bfloat16)
    out2 = jax.block_until_ready(regcat_loss(logits2, labels2, tile_rows=16))
    ref2 = _reference(logits2, labels2)
    assert jnp.allclose(out2, ref2, rtol=1e-4, atol=1e-4), (out2, ref2)

    # Case 3: f32 labels, 8-row tiles, batch not a multiple of the tile.
    B3, N3 = 20, 128
    logits3 = jax.random.normal(k1, (B3, N3), dtype=jnp.float32)
    labels3 = jax.random.bernoulli(k2, 0.5, (B3, N3)).astype(jnp.float32)
    out3 = jax.block_until_ready(regcat_loss(logits3, labels3, tile_rows=8))
    ref3 = _reference(logits3, labels3)
    assert jnp.allclose(out3, ref3, rtol=1e-4, atol=1e-4), (out3, ref3)

    # Case 4: explicit rho (intended semantics of the module's non-None path).
    out4 = jax.block_until_ready(regcat_loss(logits1, labels1, rho=1.0))
    ref4 = _reference(logits1, labels1, rho=1.0)
    assert jnp.allclose(out4, ref4, rtol=1e-4, atol=1e-4), (out4, ref4)

    print("KERNEL_OK")
</pallas_src>

<mosaic_0001>
module attributes {stable_mosaic.version = 11 : i64} {
  func.func @_regcat_kernel(%arg0: i32, %arg1: i32, %arg2: memref<32x256xf32, #tpu.memory_space<vmem>>, %arg3: memref<32x256xbf16, #tpu.memory_space<vmem>>, %arg4: memref<1x8x256xf32, #tpu.memory_space<vmem>>) attributes {dimension_semantics = [#tpu.dimension_semantics<parallel>, #tpu.dimension_semantics<arbitrary>], iteration_bounds = array<i64: 1, 1>, scalar_prefetch = 0 : i64, scratch_operands = 0 : i64, tpu.core_type = #tpu.core_type<tc>, window_params = [{transform_indices = @transform_0, window_bounds = array<i64: 32, 256>}, {transform_indices = @transform_1, window_bounds = array<i64: 32, 256>}, {transform_indices = @transform_2, window_bounds = array<i64: 1, 8, 256>}]} {
    %c0_i32 = arith.constant 0 : i32
    %0 = arith.cmpi eq, %arg1, %c0_i32 : i32
    %1 = arith.extui %0 : i1 to i32
    %c0_i32_0 = arith.constant 0 : i32
    %2 = arith.cmpi ne, %1, %c0_i32_0 : i32
    scf.if %2 {
      %cst_13 = arith.constant 0.000000e+00 : f32
      %19 = vector.broadcast %cst_13 : f32 to vector<1x8x256xf32>
      %c0_14 = arith.constant 0 : index
      %c0_15 = arith.constant 0 : index
      %c0_16 = arith.constant 0 : index
      %20 = vector.load %arg4[%c0_14, %c0_15, %c0_16] : memref<1x8x256xf32, #tpu.memory_space<vmem>>, vector<1x8x256xf32>
      tpu.vector_store %arg4[%c0_14, %c0_15, %c0_16], %19 {strides = array<i32>} : memref<1x8x256xf32, #tpu.memory_space<vmem>>, vector<1x8x256xf32>,
    } else {
    }
    %c0 = arith.constant 0 : index
    %c0_1 = arith.constant 0 : index
    %3 = vector.load %arg2[%c0, %c0_1] : memref<32x256xf32, #tpu.memory_space<vmem>>, vector<32x256xf32>
    %c0_2 = arith.constant 0 : index
    %c0_3 = arith.constant 0 : index
    %4 = vector.load %arg3[%c0_2, %c0_3] : memref<32x256xbf16, #tpu.memory_space<vmem>>, vector<32x256xbf16>
    %5 = arith.extf %4 : vector<32x256xbf16> to vector<32x256xf32>
    %cst = arith.constant 3.276800e+04 : f32
    %6 = vector.broadcast %cst : f32 to vector<32x256xf32>
    %7 = arith.mulf %6, %3 : vector<32x256xf32>
    %cst_4 = arith.constant 2.000000e+00 : f32
    %8 = vector.broadcast %cst_4 : f32 to vector<32x256xf32>
    %9 = arith.mulf %8, %5 : vector<32x256xf32>
    %cst_5 = arith.constant 1.000000e+00 : f32
    %10 = vector.broadcast %cst_5 : f32 to vector<32x256xf32>
    %11 = arith.subf %9, %10 : vector<32x256xf32>
    %12 = arith.subf %7, %11 : vector<32x256xf32>
    %13 = arith.mulf %3, %12 : vector<32x256xf32>
    %c0_6 = arith.constant 0 : index
    %c0_7 = arith.constant 0 : index
    %c0_8 = arith.constant 0 : index
    %14 = vector.load %arg4[%c0_6, %c0_7, %c0_8] : memref<1x8x256xf32, #tpu.memory_space<vmem>>, vector<1x8x256xf32>
    %15 = vector.shape_cast %13 : vector<32x256xf32> to vector<1x4x8x256xf32>
    %cst_9 = arith.constant dense<0.000000e+00> : vector<1x8x256xf32>
    %16 = vector.multi_reduction <add>, %15, %cst_9 [1] : vector<1x4x8x256xf32> to vector<1x8x256xf32>
    %17 = arith.addf %14, %16 : vector<1x8x256xf32>
    %c0_10 = arith.constant 0 : index
    %c0_11 = arith.constant 0 : index
    %c0_12 = arith.constant 0 : index
    %18 = vector.load %arg4[%c0_10, %c0_11, %c0_12] : memref<1x8x256xf32, #tpu.memory_space<vmem>>, vector<1x8x256xf32>
    tpu.vector_store %arg4[%c0_10, %c0_11, %c0_12], %17 {strides = array<i32>} : memref<1x8x256xf32, #tpu.memory_space<vmem>>, vector<1x8x256xf32>,
    return
  }
  func.func @transform_0(%arg0: i32, %arg1: i32) -> (i32, i32) {
    %c1_i32 = arith.constant 1 : i32
    %0 = arith.muli %arg0, %c1_i32 : i32
    %1 = arith.addi %0, %arg1 : i32
    %c0_i32 = arith.constant 0 : i32
    %2 = arith.minsi %1, %c0_i32 : i32
    %c0_i32_0 = arith.constant 0 : i32
    %c0_i32_1 = arith.constant 0 : i32
    return %2, %c0_i32_0 : i32, i32
  }
  func.func @transform_1(%arg0: i32, %arg1: i32) -> (i32, i32) {
    %c1_i32 = arith.constant 1 : i32
    %0 = arith.muli %arg0, %c1_i32 : i32
    %1 = arith.addi %0, %arg1 : i32
    %c0_i32 = arith.constant 0 : i32
    %2 = arith.minsi %1, %c0_i32 : i32
    %c0_i32_0 = arith.constant 0 : i32
    %c0_i32_1 = arith.constant 0 : i32
    return %2, %c0_i32_0 : i32, i32
  }
  func.func @transform_2(%arg0: i32, %arg1: i32) -> (i32, i32, i32) {
    %c0_i32 = arith.constant 0 : i32
    %c0_i32_0 = arith.constant 0 : i32
    %c0_i32_1 = arith.constant 0 : i32
    return %arg0, %c0_i32, %c0_i32_0 : i32, i32, i32
  }
}

</mosaic_0001>

<llo_original>
// kernel: tpu_custom_call.1
$region0: #{tpu_custom_call.1}
  #allocation0 [shape = 'u32[]', space=smem, size = 0x4, offset = 0x4, fixed_abs, tag = 'smem constant byte address 0x4 - core index']
  #allocation1 [shape = 'u32[144,128]{1,0:T(1,128)}', space=vmem, size = 0x12000, scoped, tag = 'internal scratch']
  %s0 = inlined_call_operand.hbm [shape: f32[32,256], index: 0, kind: input, shape index: {}]
  %s1 = inlined_call_operand.hbm [shape: bf16[32,256], index: 1, kind: input, shape index: {}]
  %s2 = inlined_call_operand.hbm [shape: f32[1,8,256], index: 2, kind: output, shape index: {}]
  %s3 = sld [smem:[#allocation0]]
  $region30: #{tpu_custom_call.1} parent=0
    _
  %s5 = ssub.s32 1, %s3
  %s6 = scalar_select 0, %s5, %s3
  $region1: #{tpu_custom_call.1} parent=0
    #allocation2 [shape = 'u8[32768]{0}', space=vmem, size = 0x8000, scoped, tag = 'input window, operand 0, single buffered']
    #allocation3 [shape = 's32[1]{0}', space=sflag, size = 0x4, scoped, tag = 'scoped memory for tpu_custom_call.1']
    #allocation4 [shape = 's32[1]{0}', space=sflag, size = 0x4, scoped, tag = 'scoped memory for tpu_custom_call.1']
    #allocation5 [shape = 'u8[16384]{0}', space=vmem, size = 0x4000, scoped, tag = 'input window, operand 1, single buffered']
    #allocation6 [shape = 's32[1]{0}', space=sflag, size = 0x4, scoped, tag = 'scoped memory for tpu_custom_call.1']
    #allocation7 [shape = 'u8[8192]{0}', space=vmem, size = 0x2000, scoped, tag = 'output window, operand 0, single buffered']
    %7 = vsyncpa [#allocation3], 0
    %8 = vsyncpa [#allocation6], 0
    %9 = vsyncpa [#allocation4], 0
    // Predicated region
    $region2: #{tpu_custom_call.1} parent=1 // pred_check
      _
    $region3: #{tpu_custom_call.1} parent=1 // pred_check_branch
      %11 = sbr.rel (0) target = $region5
    $region4: #{tpu_custom_call.1} parent=1 // pred_region
      %s12 = sadd.s32 0, 0
      %p13 = scmp.lt.s32.totalorder %s12, 0
      %s14 = scalar_select %p13, %s12, 0
      %s15 = smul.u32 4, %s14
      %s17 = ssub.s32 1024, 1024
      %18 = vsyncadd [#allocation3], %s17
      %s19 = smul.addr %s15, 2
      %s20 = smul.addr %s19, 128
      %s21 = scalar_lea.hbm %s0, %s20
      %s22 = sshll.u32 [#allocation2], 4
      %s23 = int_to_ptr.vmem [resolvable:$true] %s22
      %28 = dma.hbm_to_vmem [thread:$0]  %s21, 1024, %s23, [#allocation3], 256, 256, 16
    $region5: #{tpu_custom_call.1} parent=1 // pred_fallthru
      _
    // Predicated region
    $region6: #{tpu_custom_call.1} parent=1 // pred_check
      _
    $region7: #{tpu_custom_call.1} parent=1 // pred_check_branch
      %30 = sbr.rel (0) target = $region9
    $region8: #{tpu_custom_call.1} parent=1 // pred_region
      %s31 = sadd.s32 0, 0
      %p32 = scmp.lt.s32.totalorder %s31, 0
      %s33 = scalar_select %p32, %s31, 0
      %s34 = smul.u32 4, %s33
      %s36 = ssub.s32 512, 512
      %37 = vsyncadd [#allocation6], %s36
      %s38 = smul.addr %s34, 2
      %s39 = smul.addr %s38, 64
      %s40 = scalar_lea.hbm %s1, %s39
      %s41 = sshll.u32 [#allocation5], 4
      %s42 = int_to_ptr.vmem [resolvable:$true] %s41
      %47 = dma.hbm_to_vmem [thread:$0]  %s40, 512, %s42, [#allocation6], 128, 128, 8
    $region9: #{tpu_custom_call.1} parent=1 // pred_fallthru
      _
    // Predicated region
    $region10: #{tpu_custom_call.1} parent=1 // pred_check
      _
    $region11: #{tpu_custom_call.1} parent=1 // pred_check_branch
      %49 = sbr.rel (0) target = $region13
    $region12: #{tpu_custom_call.1} parent=1 // pred_region
      %50 = dma.done [#allocation3], 1024
    $region13: #{tpu_custom_call.1} parent=1 // pred_fallthru
      _
    // Predicated region
    $region14: #{tpu_custom_call.1} parent=1 // pred_check
      _
    $region15: #{tpu_custom_call.1} parent=1 // pred_check_branch
      %52 = sbr.rel (0) target = $region17
    $region16: #{tpu_custom_call.1} parent=1 // pred_region
      %53 = dma.done [#allocation6], 512
    $region17: #{tpu_custom_call.1} parent=1 // pred_fallthru
      _
    %s54 = sadd.s32 0, 0
    %p55 = scmp.lt.s32.totalorder %s54, 0
    %s56 = scalar_select %p55, %s54, 0
    %s57 = smul.u32 4, %s56
    %s58 = sadd.s32 0, 0
    %p59 = scmp.lt.s32.totalorder %s58, 0
    %s60 = scalar_select %p59, %s58, 0
    %s61 = smul.u32 4, %s60
    %p62 = scmp.eq.s32.totalorder 0, 0
    // Predicated region
    $region18: #{tpu_custom_call.1} parent=1 // pred_check
      %p63 = pneg %p62
    $region19: #{tpu_custom_call.1} parent=1 // pred_check_branch
      %65 = sbr.rel (%p63) target = $region21
    $region20: #{tpu_custom_call.1} parent=1 // pred_region
      %66 = vst [vmem:[#allocation7] sm:$0xff] 0.0
      %67 = vst [vmem:[#allocation7 + $0x8] sm:$0xff] 0.0
    $region21: #{tpu_custom_call.1} parent=1 // pred_fallthru
      _
    %v68 = vld [vmem:[#allocation2] sm:$0xff]
    %v69 = vld [vmem:[#allocation2 + $0x8] sm:$0xff]
    %v70 = vld [vmem:[#allocation2 + $0x10] sm:$0xff]
    %v71 = vld [vmem:[#allocation2 + $0x18] sm:$0xff]
    %v72 = vld [vmem:[#allocation2 + $0x20] sm:$0xff]
    %v73 = vld [vmem:[#allocation2 + $0x28] sm:$0xff]
    %v74 = vld [vmem:[#allocation2 + $0x30] sm:$0xff]
    %v75 = vld [vmem:[#allocation2 + $0x38] sm:$0xff]
    %v76 = vld [vmem:[#allocation5] sm:$0xff]
    %v77 = vld [vmem:[#allocation5 + $0x8] sm:$0xff]
    %v78 = vld [vmem:[#allocation5 + $0x10] sm:$0xff]
    %v79 = vld [vmem:[#allocation5 + $0x18] sm:$0xff]
    %v80 = vunpack.c.l.bf16 %v76
    %v81 = vunpack.c.h.bf16 %v76
    %v82 = vunpack.c.l.bf16 %v77
    %v83 = vunpack.c.h.bf16 %v77
    %v84 = vunpack.c.l.bf16 %v78
    %v85 = vunpack.c.h.bf16 %v78
    %v86 = vunpack.c.l.bf16 %v79
    %v87 = vunpack.c.h.bf16 %v79
    %v88 = vmul.f32 %v68, 32768.0
    %v89 = vmul.f32 %v69, 32768.0
    %v90 = vmul.f32 %v70, 32768.0
    %v91 = vmul.f32 %v71, 32768.0
    %v92 = vmul.f32 %v72, 32768.0
    %v93 = vmul.f32 %v73, 32768.0
    %v94 = vmul.f32 %v74, 32768.0
    %v95 = vmul.f32 %v75, 32768.0
    %v96 = vmul.f32 %v80, 2.0
    %v97 = vmul.f32 %v81, 2.0
    %v98 = vmul.f32 %v82, 2.0
    %v99 = vmul.f32 %v83, 2.0
    %v100 = vmul.f32 %v84, 2.0
    %v101 = vmul.f32 %v85, 2.0
    %v102 = vmul.f32 %v86, 2.0
    %v103 = vmul.f32 %v87, 2.0
    %v104 = vsub.f32 %v96, 1.0
    %v105 = vsub.f32 %v97, 1.0
    %v106 = vsub.f32 %v98, 1.0
    %v107 = vsub.f32 %v99, 1.0
    %v108 = vsub.f32 %v100, 1.0
    %v109 = vsub.f32 %v101, 1.0
    %v110 = vsub.f32 %v102, 1.0
    %v111 = vsub.f32 %v103, 1.0
    %v112 = vsub.f32 %v88, %v104
    %v113 = vsub.f32 %v89, %v105
    %v114 = vsub.f32 %v90, %v106
    %v115 = vsub.f32 %v91, %v107
    %v116 = vsub.f32 %v92, %v108
    %v117 = vsub.f32 %v93, %v109
    %v118 = vsub.f32 %v94, %v110
    %v119 = vsub.f32 %v95, %v111
    %v120 = vmul.f32 %v68, %v112
    %v121 = vmul.f32 %v69, %v113
    %v122 = vmul.f32 %v70, %v114
    %v123 = vmul.f32 %v71, %v115
    %v124 = vmul.f32 %v72, %v116
    %v125 = vmul.f32 %v73, %v117
    %v126 = vmul.f32 %v74, %v118
    %v127 = vmul.f32 %v75, %v119
    %v128 = vld [vmem:[#allocation7] sm:$0xff]
    %v129 = vld [vmem:[#allocation7 + $0x8] sm:$0xff]
    %v130 = vadd.f32 %v120, %v122
    %v131 = vadd.f32 %v130, %v124
    %v132 = vadd.f32 %v131, %v126
    %v133 = vadd.f32 %v121, %v123
    %v134 = vadd.f32 %v133, %v125
    %v135 = vadd.f32 %v134, %v127
    %v136 = vadd.f32 %v128, %v132
    %v137 = vadd.f32 %v129, %v135
    %138 = vst [vmem:[#allocation7] sm:$0xff] %v136
    %139 = vst [vmem:[#allocation7 + $0x8] sm:$0xff] %v137
    // Predicated region
    $region22: #{tpu_custom_call.1} parent=1 // pred_check
      _
    $region23: #{tpu_custom_call.1} parent=1 // pred_check_branch
      %141 = sbr.rel (0) target = $region25
    $region24: #{tpu_custom_call.1} parent=1 // pred_region
      %s143 = ssub.s32 256, 256
      %144 = vsyncadd [#allocation4], %s143
      %s146 = sshll.u32 [#allocation7], 4
      %s147 = int_to_ptr.vmem [resolvable:$true] %s146
      %149 = dma.vmem_to_hbm [thread:$0]  %s147, 256, %s2, [#allocation4]
    $region25: #{tpu_custom_call.1} parent=1 // pred_fallthru
      _
    // Predicated region
    $region26: #{tpu_custom_call.1} parent=1 // pred_check
      _
    $region27: #{tpu_custom_call.1} parent=1 // pred_check_branch
      %151 = sbr.rel (0) target = $region29
    $region28: #{tpu_custom_call.1} parent=1 // pred_region
      %152 = dma.done [#allocation4], 256
    $region29: #{tpu_custom_call.1} parent=1 // pred_fallthru
      _
    %153 = vsyncpa [#allocation3], 1
    %154 = vsyncpa [#allocation6], 1
    %155 = vsyncpa [#allocation4], 1

</llo_original>
